<compile_context>
chip_gen: v5e
topology: v5e:2x2
jax: 0.10.0
libtpu: 0.0.40
codegen_flags: <defaults>
</compile_context>

<pallas_src>
import math

import jax
import jax.numpy as jnp
from jax.experimental import pallas as pl
from jax.experimental.pallas import tpu as pltpu

# ---- model hyperparameters (small, consistent with the module) ----
B = 2          # batch
S = 8          # sequence length
HIDDEN = 32    # hidden_dim
INTER = 64     # inter_dim
CLASSES = 10   # classes
EPS = 1e-6


def _layernorm(v):
    # torch.nn.LayerNorm semantics: biased variance over last dim, eps inside sqrt.
    mu = jnp.mean(v, axis=-1, keepdims=True)
    var = jnp.mean((v - mu) ** 2, axis=-1, keepdims=True)
    return (v - mu) * jax.lax.rsqrt(var + EPS)


def tclassifier_kernel(x0_ref, w1_ref, w2_ref, o_ref):
    """Whole problem in one invocation: CLS tokens + both weights resident in VMEM."""
    x0 = x0_ref[...].astype(jnp.float32)           # (B, H) — already CLS-only

    # LayerNorm over hidden dim (affine=False).
    xn = _layernorm(x0)                            # (B, H)

    # Dropout: identity (eval mode / rate 0).
    # TODO(synk): training-mode dropout masking not implemented (inference path only).

    # ffn: Linear(hidden -> inter, bias=False) followed by exact (erf) GELU.
    h1 = jnp.dot(xn, w1_ref[...], preferred_element_type=jnp.float32)     # (B, INTER)
    g = 0.5 * h1 * (1.0 + jax.lax.erf(h1 * (1.0 / math.sqrt(2.0))))       # exact GELU

    # output: Linear(inter -> classes, bias=False)
    logits = jnp.dot(g, w2_ref[...], preferred_element_type=jnp.float32)  # (B, CLASSES)

    o_ref[...] = logits.astype(o_ref.dtype)


@jax.jit
def tclassifier_forward(x, w_ffn, w_out):
    # CLS-token slice done in the wrapper: LayerNorm (per-row, affine=False)
    # commutes with row selection, so normalizing only x[:, 0, :] is exact and
    # the kernel DMAs 8x less input.
    x0 = x[:, 0, :]                                # (B, H)
    b, h = x0.shape
    inter = w_ffn.shape[1]
    classes = w_out.shape[1]

    itemsize = jnp.dtype(x.dtype).itemsize
    cost = pl.CostEstimate(
        flops=2 * b * (h * inter + inter * classes),
        transcendentals=b * inter,                 # erf per ffn activation
        bytes_accessed=(x0.size + w_ffn.size + w_out.size + b * classes) * itemsize,
    )

    return pl.pallas_call(
        tclassifier_kernel,
        out_shape=jax.ShapeDtypeStruct((b, classes), x.dtype),
        in_specs=[
            pl.BlockSpec(memory_space=pltpu.MemorySpace.VMEM),   # x0: (B, H) whole array
            pl.BlockSpec(memory_space=pltpu.MemorySpace.VMEM),   # ffn weight (H, INTER)
            pl.BlockSpec(memory_space=pltpu.MemorySpace.VMEM),   # output weight (INTER, CLASSES)
        ],
        out_specs=pl.BlockSpec(memory_space=pltpu.MemorySpace.VMEM),
        cost_estimate=cost,
    )(x0, w_ffn, w_out)


def tclassifier_reference(x, w_ffn, w_out):
    """Pure-JAX reference mirroring the PyTorch forward exactly (dropout = identity)."""
    xf = x.astype(jnp.float32)
    xn = _layernorm(xf)                     # layernorm on full (B, S, H), as in torch
    x0 = xn[:, 0, :]                        # CLS token
    h1 = x0 @ w_ffn
    g = 0.5 * h1 * (1.0 + jax.lax.erf(h1 / math.sqrt(2.0)))
    return g @ w_out


if __name__ == "__main__":
    key = jax.random.PRNGKey(0)
    kx, k1, k2 = jax.random.split(key, 3)

    x = jax.random.normal(kx, (B, S, HIDDEN), dtype=jnp.float32)
    # deterministic synthetic weights, (in, out) layout
    w_ffn = jax.random.normal(k1, (HIDDEN, INTER), dtype=jnp.float32) * 0.05
    w_out = jax.random.normal(k2, (INTER, CLASSES), dtype=jnp.float32) * 0.05

    out = tclassifier_forward(x, w_ffn, w_out)
    out = jax.block_until_ready(out)

    ref = tclassifier_reference(x, w_ffn, w_out)
    assert out.shape == (B, CLASSES)
    assert jnp.allclose(out, ref, atol=1e-4, rtol=1e-4), (
        f"max abs err {jnp.max(jnp.abs(out - ref))}"
    )
    print("KERNEL_OK")
</pallas_src>

<mosaic_0001>
module attributes {stable_mosaic.version = 11 : i64} {
  func.func @tclassifier_kernel(%arg0: memref<2x32xf32, #tpu.memory_space<vmem>>, %arg1: memref<32x64xf32, #tpu.memory_space<vmem>>, %arg2: memref<64x10xf32, #tpu.memory_space<vmem>>, %arg3: memref<2x10xf32, #tpu.memory_space<vmem>>) attributes {dimension_semantics = [], scalar_prefetch = 0 : i64, scratch_operands = 0 : i64, tpu.core_type = #tpu.core_type<tc>} {
    %c0 = arith.constant 0 : index
    %c0_0 = arith.constant 0 : index
    %0 = vector.load %arg0[%c0, %c0_0] : memref<2x32xf32, #tpu.memory_space<vmem>>, vector<2x32xf32>
    %cst = arith.constant dense<0.000000e+00> : vector<2xf32>
    %1 = vector.multi_reduction <add>, %0, %cst [1] : vector<2x32xf32> to vector<2xf32>
    %2 = vector.shape_cast %1 : vector<2xf32> to vector<2x1xf32>
    %cst_1 = arith.constant 3.200000e+01 : f32
    %3 = vector.broadcast %cst_1 : f32 to vector<2x1xf32>
    %4 = arith.divf %2, %3 : vector<2x1xf32>
    %5 = vector.broadcast %4 : vector<2x1xf32> to vector<2x32xf32>
    %6 = arith.subf %0, %5 : vector<2x32xf32>
    %7 = arith.mulf %6, %6 : vector<2x32xf32>
    %cst_2 = arith.constant dense<0.000000e+00> : vector<2xf32>
    %8 = vector.multi_reduction <add>, %7, %cst_2 [1] : vector<2x32xf32> to vector<2xf32>
    %9 = vector.shape_cast %8 : vector<2xf32> to vector<2x1xf32>
    %cst_3 = arith.constant 3.200000e+01 : f32
    %10 = vector.broadcast %cst_3 : f32 to vector<2x1xf32>
    %11 = arith.divf %9, %10 : vector<2x1xf32>
    %12 = vector.broadcast %4 : vector<2x1xf32> to vector<2x32xf32>
    %13 = arith.subf %0, %12 : vector<2x32xf32>
    %cst_4 = arith.constant 9.99999997E-7 : f32
    %14 = vector.broadcast %cst_4 : f32 to vector<2x1xf32>
    %15 = arith.addf %11, %14 : vector<2x1xf32>
    %16 = math.rsqrt %15 : vector<2x1xf32>
    %17 = vector.broadcast %16 : vector<2x1xf32> to vector<2x32xf32>
    %18 = arith.mulf %13, %17 : vector<2x32xf32>
    %c0_5 = arith.constant 0 : index
    %c0_6 = arith.constant 0 : index
    %19 = vector.load %arg1[%c0_5, %c0_6] : memref<32x64xf32, #tpu.memory_space<vmem>>, vector<32x64xf32>
    %cst_7 = arith.constant dense<0.000000e+00> : vector<2x64xf32>
    %20 = tpu.matmul %18, %19, %cst_7 {dimension_numbers = #tpu.dot_dimension_numbers<[1], [0], [0], [1], [0, 0, 1, 1], [], []>} : vector<2x32xf32>, vector<32x64xf32>, vector<2x64xf32> -> vector<2x64xf32>
    %cst_8 = arith.constant 5.000000e-01 : f32
    %21 = vector.broadcast %cst_8 : f32 to vector<2x64xf32>
    %22 = arith.mulf %21, %20 : vector<2x64xf32>
    %cst_9 = arith.constant 0.707106769 : f32
    %23 = vector.broadcast %cst_9 : f32 to vector<2x64xf32>
    %24 = arith.mulf %20, %23 : vector<2x64xf32>
    %25 = math.erf %24 : vector<2x64xf32>
    %cst_10 = arith.constant 1.000000e+00 : f32
    %26 = vector.broadcast %cst_10 : f32 to vector<2x64xf32>
    %27 = arith.addf %26, %25 : vector<2x64xf32>
    %28 = arith.mulf %22, %27 : vector<2x64xf32>
    %c0_11 = arith.constant 0 : index
    %c0_12 = arith.constant 0 : index
    %29 = vector.load %arg2[%c0_11, %c0_12] : memref<64x10xf32, #tpu.memory_space<vmem>>, vector<64x10xf32>
    %cst_13 = arith.constant dense<0.000000e+00> : vector<2x10xf32>
    %30 = tpu.matmul %28, %29, %cst_13 {dimension_numbers = #tpu.dot_dimension_numbers<[1], [0], [0], [1], [0, 0, 1, 1], [], []>} : vector<2x64xf32>, vector<64x10xf32>, vector<2x10xf32> -> vector<2x10xf32>
    %c0_14 = arith.constant 0 : index
    %c0_15 = arith.constant 0 : index
    %31 = vector.load %arg3[%c0_14, %c0_15] : memref<2x10xf32, #tpu.memory_space<vmem>>, vector<2x10xf32>
    tpu.vector_store %arg3[%c0_14, %c0_15], %30 {strides = array<i32>} : memref<2x10xf32, #tpu.memory_space<vmem>>, vector<2x10xf32>,
    return
  }
}

</mosaic_0001>

<llo_original>
// kernel: tclassifier_forward.1
$region0: #{tclassifier_forward.1}
  #allocation0 [shape = 'u32[]', space=smem, size = 0x4, offset = 0x4, fixed_abs, tag = 'smem constant byte address 0x4 - core index']
  #allocation1 [shape = 'u32[72,128]{1,0:T(1,128)}', space=vmem, size = 0x9000, scoped, tag = 'internal scratch']
  %s0 = inlined_call_operand.vmem [shape: f32[2,32], index: 0, kind: input, shape index: {}]
  %s1 = inlined_call_operand.vmem [shape: f32[32,64], index: 1, kind: input, shape index: {}]
  %s2 = inlined_call_operand.vmem [shape: f32[64,10], index: 2, kind: input, shape index: {}]
  %s3 = inlined_call_operand.hbm [shape: f32[2,10], index: 3, kind: output, shape index: {}]
  %s4 = sld [smem:[#allocation0]]
  $region22: #{tclassifier_forward.1} parent=0
    _
  %s6 = ssub.s32 1, %s4
  %s7 = scalar_select 0, %s6, %s4
  $region1: #{tclassifier_forward.1} parent=0
    #allocation2 [shape = 'u8[1024]{0}', space=vmem, size = 0x400, scoped, tag = 'output window, operand 0, single buffered']
    #allocation3 [shape = 's32[1]{0}', space=sflag, size = 0x4, scoped, tag = 'scoped memory for tclassifier_forward.1']
    %8 = vsyncpa [#allocation3], 0
    // Predicated region
    $region2: #{tclassifier_forward.1} parent=1 // pred_check
      _
    $region3: #{tclassifier_forward.1} parent=1 // pred_check_branch
      %10 = sbr.rel (0) target = $region5
    $region4: #{tclassifier_forward.1} parent=1 // pred_region
      _
    $region5: #{tclassifier_forward.1} parent=1 // pred_fallthru
      _
    // Predicated region
    $region6: #{tclassifier_forward.1} parent=1 // pred_check
      _
    $region7: #{tclassifier_forward.1} parent=1 // pred_check_branch
      %12 = sbr.rel (0) target = $region9
    $region8: #{tclassifier_forward.1} parent=1 // pred_region
      _
    $region9: #{tclassifier_forward.1} parent=1 // pred_fallthru
      _
    // Predicated region
    $region10: #{tclassifier_forward.1} parent=1 // pred_check
      _
    $region11: #{tclassifier_forward.1} parent=1 // pred_check_branch
      %14 = sbr.rel (0) target = $region13
    $region12: #{tclassifier_forward.1} parent=1 // pred_region
      _
    $region13: #{tclassifier_forward.1} parent=1 // pred_fallthru
      _
    %v15 = vld [vmem:[%s0] sm:$0x3]
    %vm16 = vcmask 254976
    %v17 = vsel %vm16, %v15, 0.0
    %18 = vadd.xlane.f32.xlu0 %v17
    %v19 = vpop.xlane.xlu0 %18
    %v20 = vrcp.pop 32.0
    %v21 = vmul.f32 32.0, %v20
    %v22 = vsub.f32 1.0, %v21
    %v23 = vmul.f32 %v20, %v22
    %v24 = vadd.f32 %v20, %v23
    %vm25 = vweird.f32 %v20
    %v26 = vsel %vm25, %v20, %v24
    %v27 = vmul.f32 %v19, %v26
    %v28 = vsub.f32 %v15, %v27
    %v29 = vmul.f32 %v28, %v28
    %v30 = vsel %vm16, %v29, 0.0
    %31 = vadd.xlane.f32.xlu0 %v30
    %v32 = vpop.xlane.xlu0 %31
    %v33 = vmul.f32 %v32, %v26
    %v34 = vadd.f32 %v33, 1e-06
    %v35 = vrsqrt.pop %v34
    %v36 = vmul.f32 %v35, %v34
    %v37 = vmul.f32 %v36, %v35
    %v38 = vmul.f32 0.5, %v37
    %v39 = vsub.f32 1.5, %v38
    %v40 = vmul.f32 %v35, %v39
    %vm41 = vweird.f32 %v34
    %vm42 = vweird.f32 %v35
    %vm43 = vmor %vm41, %vm42
    %v44 = vsel %vm43, %v35, %v40
    %v45 = vmul.f32 %v28, %v44
    %v46 = vld [vmem:[%s1] sm:$0xff]
    %v47 = vld [vmem:[%s1 + $0x8] sm:$0xff]
    %v48 = vld [vmem:[%s1 + $0x10] sm:$0xff]
    %v49 = vld [vmem:[%s1 + $0x18] sm:$0xff]
    %vm50 = vcmask 261120
    %v52 = vsel %vm50, %v45, 0
    %54 = vmatpush.msra.mxu0 0.0
    %55 = vmatpush.msra.mxu0 0.0
    %56 = vmatpush.msra.mxu0 0.0
    %57 = vmatpush.msra.mxu0 0.0
    %58 = vmatpush.msra.mxu0 0.0
    %59 = vmatpush.msra.mxu0 0.0
    %60 = vmatpush.msra.mxu0 0.0
    %61 = vmatpush.msra.mxu0 0.0
    %62 = vmatpush.msra.mxu0 0.0
    %63 = vmatpush.msra.mxu0 0.0
    %64 = vmatpush.msra.mxu0 0.0
    %65 = vmatpush.msra.mxu0 0.0
    %66 = vmatpush.msra.mxu0 %v49
    %67 = vmatpush.msra.mxu0 %v48
    %68 = vmatpush.msra.mxu0 %v47
    %69 = vmatpush.msra.mxu0 %v46
    %70 = vmatmul.f32.gmra.mxu0 %v52
    %v71 = vpop.f32.mrf.mxu0
    %v72 = vadd.f32 0.0, %v71
    %73 = vdwg.mxu0
    %v74 = vmul.f32 %v72, 0.5
    %v75 = vmul.f32 %v72, 0.70710677
    %v76 = vmul.f32 %v75, %v75
    %v77 = vmin.f32 16.0, %v76
    %v78 = vmul.f32 %v77, 2.1237322e-06
    %v79 = vadd.f32 %v78, 0.00028619796
    %v80 = vmul.f32 %v77, %v79
    %v81 = vadd.f32 %v80, 0.0036580483
    %v82 = vmul.f32 %v77, %v81
    %v83 = vadd.f32 %v82, 0.05243302
    %v84 = vmul.f32 %v77, %v83
    %v85 = vadd.f32 %v84, 0.18741608
    %v86 = vmul.f32 %v77, %v85
    %v87 = vadd.f32 %v86, 1.1283791
    %v88 = vmul.f32 %v75, %v87
    %v89 = vmul.f32 %v77, 3.8918573e-05
    %v90 = vadd.f32 %v89, 0.001143296
    %v91 = vmul.f32 %v77, %v90
    %v92 = vadd.f32 %v91, 0.014752088
    %v93 = vmul.f32 %v77, %v92
    %v94 = vadd.f32 %v93, 0.112945676
    %v95 = vmul.f32 %v77, %v94
    %v96 = vadd.f32 %v95, 0.4994258
    %v97 = vmul.f32 %v77, %v96
    %v98 = vadd.f32 %v97, 1.0
    %v99 = vrcp.pop %v98
    %v100 = vmul.f32 %v98, %v99
    %v101 = vsub.f32 1.0, %v100
    %v102 = vmul.f32 %v99, %v101
    %v103 = vadd.f32 %v99, %v102
    %vm104 = vweird.f32 %v98
    %vm105 = vweird.f32 %v99
    %vm106 = vmor %vm104, %vm105
    %v107 = vsel %vm106, %v99, %v103
    %v108 = vand.u32 2147483647, %v98
    %vm109 = vcmp.eq.f32.partialorder %v108, 8.507059e+37
    %v110 = vand.u32 %v98, 2147483648
    %v111 = vor.u32 1.1754944e-38, %v110
    %v112 = vsel %vm109, %v111, %v107
    %v113 = vmul.f32 %v88, %v112
    %v114 = vmin.f32 %v113, 1.0
    %v115 = vmax.f32 %v114, -1.0
    %v116 = vadd.f32 %v115, 1.0
    %v117 = vmul.f32 %v74, %v116
    %v118 = vld [vmem:[%s2] sm:$0xff]
    %v119 = vld [vmem:[%s2 + $0x8] sm:$0xff]
    %v120 = vld [vmem:[%s2 + $0x10] sm:$0xff]
    %v121 = vld [vmem:[%s2 + $0x18] sm:$0xff]
    %v122 = vld [vmem:[%s2 + $0x20] sm:$0xff]
    %v123 = vld [vmem:[%s2 + $0x28] sm:$0xff]
    %v124 = vld [vmem:[%s2 + $0x30] sm:$0xff]
    %v125 = vld [vmem:[%s2 + $0x38] sm:$0xff]
    %vm126 = vcmask 523264
    %v128 = vsel %vm126, %v117, 0
    %130 = vmatpush.msra.mxu0 0.0
    %131 = vmatpush.msra.mxu0 0.0
    %132 = vmatpush.msra.mxu0 0.0
    %133 = vmatpush.msra.mxu0 0.0
    %134 = vmatpush.msra.mxu0 0.0
    %135 = vmatpush.msra.mxu0 0.0
    %136 = vmatpush.msra.mxu0 0.0
    %137 = vmatpush.msra.mxu0 0.0
    %138 = vmatpush.msra.mxu0 %v125
    %139 = vmatpush.msra.mxu0 %v124
    %140 = vmatpush.msra.mxu0 %v123
    %141 = vmatpush.msra.mxu0 %v122
    %142 = vmatpush.msra.mxu0 %v121
    %143 = vmatpush.msra.mxu0 %v120
    %144 = vmatpush.msra.mxu0 %v119
    %145 = vmatpush.msra.mxu0 %v118
    %146 = vmatmul.f32.gmra.mxu0 %v128
    %v147 = vpop.f32.mrf.mxu0
    %v148 = vadd.f32 0.0, %v147
    %149 = vdwg.mxu0
    %vm150 = vcmask 74752
    %151 = vst.msk [vmem:[#allocation2] sm:$0x3] %vm150, %v148
    // Predicated region
    $region14: #{tclassifier_forward.1} parent=1 // pred_check
      _
    $region15: #{tclassifier_forward.1} parent=1 // pred_check_branch
      %153 = sbr.rel (0) target = $region17
    $region16: #{tclassifier_forward.1} parent=1 // pred_region
      %155 = vsyncadd [#allocation3], 0
      %s157 = sshll.u32 [#allocation2], 4
      %s158 = int_to_ptr.vmem [resolvable:$true] %s157
      %s159 = sshll.u32 %s3, 4
      %s160 = int_to_ptr.hbm [resolvable:$true] %s159
      %162 = dma.vmem_to_hbm [thread:$0]  %s158, 32, %s160, [#allocation3]
    $region17: #{tclassifier_forward.1} parent=1 // pred_fallthru
      _
    // Predicated region
    $region18: #{tclassifier_forward.1} parent=1 // pred_check
      _
    $region19: #{tclassifier_forward.1} parent=1 // pred_check_branch
      %164 = sbr.rel (0) target = $region21
    $region20: #{tclassifier_forward.1} parent=1 // pred_region
      %166 = dma.done [#allocation3], 32
    $region21: #{tclassifier_forward.1} parent=1 // pred_fallthru
      _
    %167 = vsyncpa [#allocation3], 1

</llo_original>
